<compile_context>
chip_gen: v7x
topology: tpu7x:2x2x1
jax: 0.10.0
libtpu: 0.0.40
codegen_flags: <defaults>
</compile_context>

<pallas_src>
import functools
import math

import jax
import jax.numpy as jnp
from jax import lax
from jax.experimental import pallas as pl
from jax.experimental.pallas import tpu as pltpu

_LANE = 128  # lane-dense padded class dimension


# --------------------------------------------------------------------------
# Generation-aware budgets and tile pickers
# --------------------------------------------------------------------------
def _vmem_budget_bytes():
    """VMEM budget for this kernel (double-buffered x tiles + weights + scratch).

    v7x has 64 MiB physical VMEM per TensorCore, v5e/v6e have 128 MiB; leave
    generous headroom either way."""
    try:
        cap = int(pltpu.get_tpu_info().vmem_capacity_bytes)
    except Exception:
        cap = 64 * 1024 * 1024  # conservative (v7x-sized) default
    if cap >= 128 * 1024 * 1024:
        return 48 * 1024 * 1024  # v5e / v6e
    return 24 * 1024 * 1024      # v7x


def _valid_row_tiles(B):
    """Batch tiles satisfying the TPU sublane rule: multiple of 8 or the full dim."""
    tiles = [t for t in range(8, B + 1, 8) if B % t == 0]
    if B not in tiles:
        tiles.append(B)
    return sorted(set(tiles))


def _pick_batch_tile(B, max_tb=256):
    """Largest valid batch tile <= max_tb, preferring >= 2 steps on the parallel
    batch axis so v7x's second TensorCore has work."""
    cands = _valid_row_tiles(B)
    pref = [t for t in cands if t <= max_tb and B // t >= 2]
    if pref:
        return max(pref)
    small = [t for t in cands if t <= max_tb]
    return max(small) if small else min(cands)


def _largest_divisor_leq(n, cap, unit=1):
    """Largest d dividing n with d <= cap and (d % unit == 0 or d == n); 0 if none."""
    cap = max(1, min(int(cap), n))
    for d in range(cap, 0, -1):
        if n % d == 0 and (d % unit == 0 or d == n):
            return d
    return 0


# --------------------------------------------------------------------------
# Weight preparation (hoisted; compute once per weight)
# --------------------------------------------------------------------------
def _prepare_weights(w, b, S, L):
    """Transpose, fold the 1/S mean scale, vertically replicate W^T to L rows
    (L must be a multiple of F), and zero-pad the class axis to 128 lanes."""
    C, F = w.shape
    reps = L // F
    w_scaled = (jnp.transpose(w).astype(jnp.float32) / S)              # (F, C)
    w_rep = jnp.tile(w_scaled, (reps, 1))                              # (L, C)
    w_pad = jnp.zeros((L, _LANE), jnp.float32).at[:, :C].set(w_rep)
    b_pad = jnp.zeros((1, _LANE), jnp.float32).at[:, :C].set(b.astype(jnp.float32))
    return w_pad, b_pad


# --------------------------------------------------------------------------
# Kernels
# --------------------------------------------------------------------------
def _classify_epilogue(acc, w_ref, b_ref, logits_ref, pred_ref, class_num):
    """Single MXU contraction + bias + class mask + fused argmax."""
    logits = jnp.dot(acc, w_ref[...], preferred_element_type=jnp.float32) + b_ref[...]
    cp = logits.shape[-1]
    col = lax.broadcasted_iota(jnp.int32, logits.shape, 1)
    masked = jnp.where(col < class_num, logits, -jnp.inf)
    logits_ref[...] = masked
    row_max = jnp.max(masked, axis=-1, keepdims=True)
    idx = jnp.where(masked == row_max, col, cp)
    pred_ref[...] = jnp.min(idx, axis=-1, keepdims=True).astype(jnp.int32)


def _flat_kernel(x_ref, w_ref, b_ref, logits_ref, pred_ref, acc_ref, *,
                 class_num, chunk, chunks_per_block):
    """Lane-dense path.  x is flattened to (B, S*F); each grid step loads a
    (tb, chunks_per_block*chunk) block and folds it into a (tb, chunk) running
    sum, where chunk = lcm(F, 128)."""
    s = pl.program_id(1)

    @pl.when(s == 0)
    def _init():
        acc_ref[...] = jnp.zeros_like(acc_ref)

    if chunks_per_block <= 64:
        # Static lane-slices: zero-cost ref views, fully unrolled.
        part = x_ref[:, 0:chunk]
        for j in range(1, chunks_per_block):
            part = part + x_ref[:, j * chunk:(j + 1) * chunk]
    else:
        def body(j, p):
            off = pl.multiple_of(j * chunk, _LANE)
            return p + x_ref[:, pl.ds(off, chunk)]
        part = lax.fori_loop(1, chunks_per_block, body, x_ref[:, 0:chunk])
    acc_ref[...] += part

    @pl.when(s == pl.num_programs(1) - 1)
    def _finalize():
        _classify_epilogue(acc_ref[...], w_ref, b_ref, logits_ref, pred_ref,
                           class_num)


def _tiled3d_kernel(x_ref, w_ref, b_ref, logits_ref, pred_ref, acc_ref, *,
                    class_num):
    """Fallback path for shapes that don't divide into the lane-dense layout."""
    s = pl.program_id(1)

    @pl.when(s == 0)
    def _init():
        acc_ref[...] = jnp.zeros_like(acc_ref)

    acc_ref[...] += jnp.sum(x_ref[...], axis=1)

    @pl.when(s == pl.num_programs(1) - 1)
    def _finalize():
        _classify_epilogue(acc_ref[...], w_ref, b_ref, logits_ref, pred_ref,
                           class_num)


# --------------------------------------------------------------------------
# Wrapper
# --------------------------------------------------------------------------
def linear_mean_logits_pred(x, w, b):
    """x: (B, S, F) f32, w: (C, F) f32, b: (C,) f32 ->
    (lane-dense logits (B, 128) f32 with padded cols = -inf, pred (B, 1) i32)."""
    B, S, F = x.shape
    C = w.shape[0]
    assert C <= _LANE, "class_num > 128 would need a tiled class axis"

    budget = _vmem_budget_bytes()
    per_buf = min(8 * 1024 * 1024, budget // 3)   # per x buffer (x2 for double-buffering)

    tb = _pick_batch_tile(B)

    # Lane-dense flattened layout: chunk width L = lcm(F, 128).
    L = (F * _LANE) // math.gcd(F, _LANE)
    flat_ok = ((S * F) % L == 0) and (L <= 4096) and (tb * L * 4 <= per_buf)

    if flat_ok:
        n_chunks_total = (S * F) // L
        k = _largest_divisor_leq(n_chunks_total, per_buf // (tb * L * 4))
        k = max(k, 1)
        blk = k * L
        grid = (B // tb, n_chunks_total // k)

        w_pad, b_pad = _prepare_weights(w, b, S, L)
        x_op = x.reshape(B, S * F)                 # free metadata reshape in HBM

        kernel = functools.partial(_flat_kernel, class_num=C, chunk=L,
                                   chunks_per_block=k)
        in_specs = [
            pl.BlockSpec((tb, blk), lambda i, s: (i, s)),
            pl.BlockSpec((L, _LANE), lambda i, s: (0, 0)),
            pl.BlockSpec((1, _LANE), lambda i, s: (0, 0)),
        ]
        scratch = [pltpu.VMEM((tb, L), jnp.float32)]
        x_block_bytes = tb * blk * 4
        w_bytes = L * _LANE * 4
    else:
        # TODO(synk): pathological shapes (e.g. prime S with huge S*F) may still
        # produce an oversized unsplit block here; a pad-and-mask path would fix it.
        f_vmem_row = pl.cdiv(F, _LANE) * _LANE * 4       # lane-padded bytes per row
        ts = _largest_divisor_leq(S, max(1, per_buf // (tb * f_vmem_row)), unit=8)
        if ts == 0:
            ts = S
        grid = (B // tb, S // ts)

        w_pad, b_pad = _prepare_weights(w, b, S, F)      # L == F -> no replication
        x_op = x

        kernel = functools.partial(_tiled3d_kernel, class_num=C)
        in_specs = [
            pl.BlockSpec((tb, ts, F), lambda i, s: (i, s, 0)),
            pl.BlockSpec((F, _LANE), lambda i, s: (0, 0)),
            pl.BlockSpec((1, _LANE), lambda i, s: (0, 0)),
        ]
        scratch = [pltpu.VMEM((tb, F), jnp.float32)]
        x_block_bytes = tb * ts * f_vmem_row
        w_bytes = F * _LANE * 4

    # Rough footprint check (double-buffered inputs/outputs + scratch) and an
    # explicit, generation-aware VMEM limit for the compiler.
    need = (2 * x_block_bytes + 2 * w_bytes + 2 * _LANE * 4
            + 2 * tb * _LANE * 4 + 2 * tb * 4 + tb * max(L if flat_ok else F, 8) * 4)
    vmem_limit = int(min(max(2 * need, 16 * 1024 * 1024), budget))

    return pl.pallas_call(
        kernel,
        out_shape=(
            jax.ShapeDtypeStruct((B, _LANE), jnp.float32),
            jax.ShapeDtypeStruct((B, 1), jnp.int32),
        ),
        grid_spec=pltpu.PrefetchScalarGridSpec(
            num_scalar_prefetch=0,
            grid=grid,
            in_specs=in_specs,
            out_specs=[
                pl.BlockSpec((tb, _LANE), lambda i, s: (i, 0)),
                pl.BlockSpec((tb, 1), lambda i, s: (i, 0)),
            ],
            scratch_shapes=scratch,
        ),
        compiler_params=pltpu.CompilerParams(
            dimension_semantics=("parallel", "arbitrary"),
            vmem_limit_bytes=vmem_limit),
    )(x_op, w_pad, b_pad)


def model_forward(x, w, b, label=None):
    """Mirrors Model.forward: argmax indices if label is None, else mean CE loss."""
    logits_padded, pred = linear_mean_logits_pred(x, w, b)
    if label is None:
        return pred[:, 0]                                  # (B,) int32 (torch: int64)
    C = w.shape[0]
    logits = logits_padded[:, :C]                          # real classes only
    # TODO(synk): CrossEntropyLoss tail (logsumexp + gather + mean) stays in
    # plain JAX on the tiny (B, C) logits; fusing it would need labels as a
    # scalar-prefetch input for marginal gain at these sizes.
    logz = jax.scipy.special.logsumexp(logits, axis=-1)    # (B,)
    picked = jnp.take_along_axis(logits, label[:, None], axis=-1)[:, 0]
    return jnp.mean(logz - picked)                         # scalar


if __name__ == "__main__":
    # Small shapes consistent with the module: batch=2, seq=8, feature_num=32,
    # class_num=4.
    B, S, F, C = 2, 8, 32, 4

    key = jax.random.PRNGKey(0)
    kx, kw, kb, kl = jax.random.split(key, 4)

    x = jax.random.normal(kx, (B, S, F), dtype=jnp.float32)
    # Deterministic nn.Linear-style init: U(-1/sqrt(F), 1/sqrt(F))
    bound = 1.0 / (F ** 0.5)
    w = jax.random.uniform(kw, (C, F), dtype=jnp.float32, minval=-bound, maxval=bound)
    b = jax.random.uniform(kb, (C,), dtype=jnp.float32, minval=-bound, maxval=bound)
    label = jax.random.randint(kl, (B,), 0, C, dtype=jnp.int32)

    # Inference path (no label): argmax over classes
    pred = jax.block_until_ready(model_forward(x, w, b))
    # Training path (with label): scalar cross-entropy loss
    loss = jax.block_until_ready(model_forward(x, w, b, label))

    # Pure-JAX reference check
    logits_ref = jnp.mean(jnp.einsum("bsf,cf->bsc", x, w), axis=1) + b
    pred_ref = jnp.argmax(logits_ref, axis=-1)
    logz = jax.scipy.special.logsumexp(logits_ref, axis=-1)
    loss_ref = jnp.mean(logz - jnp.take_along_axis(logits_ref, label[:, None], -1)[:, 0])

    assert jnp.array_equal(pred, pred_ref), (pred, pred_ref)
    assert jnp.allclose(loss, loss_ref, atol=1e-5, rtol=1e-5), (loss, loss_ref)

    print("KERNEL_OK")
</pallas_src>

<mosaic_0001>
module attributes {stable_mosaic.version = 11 : i64} {
  func.func @_flat_kernel(%arg0: i32, %arg1: i32, %arg2: memref<2x256xf32, #tpu.memory_space<vmem>>, %arg3: memref<128x128xf32, #tpu.memory_space<vmem>>, %arg4: memref<1x128xf32, #tpu.memory_space<vmem>>, %arg5: memref<2x128xf32, #tpu.memory_space<vmem>>, %arg6: memref<2x1xi32, #tpu.memory_space<vmem>>, %arg7: memref<2x128xf32, #tpu.memory_space<vmem>>) attributes {dimension_semantics = [#tpu.dimension_semantics<parallel>, #tpu.dimension_semantics<arbitrary>], iteration_bounds = array<i64: 1, 1>, scalar_prefetch = 0 : i64, scratch_operands = 1 : i64, tpu.core_type = #tpu.core_type<tc>, window_params = [{transform_indices = @transform_0, window_bounds = array<i64: 2, 256>}, {pipeline_mode = #tpu.pipeline_mode<synchronous>, transform_indices = @transform_1, window_bounds = array<i64: 128, 128>}, {pipeline_mode = #tpu.pipeline_mode<synchronous>, transform_indices = @transform_2, window_bounds = array<i64: 1, 128>}, {transform_indices = @transform_3, window_bounds = array<i64: 2, 128>}, {transform_indices = @transform_4, window_bounds = array<i64: 2, 1>}]} {
    %c0_i32 = arith.constant 0 : i32
    %0 = arith.cmpi eq, %arg1, %c0_i32 : i32
    %1 = arith.extui %0 : i1 to i32
    %c0_i32_0 = arith.constant 0 : i32
    %2 = arith.cmpi ne, %1, %c0_i32_0 : i32
    scf.if %2 {
      %cst = arith.constant 0.000000e+00 : f32
      %12 = vector.broadcast %cst : f32 to vector<2x128xf32>
      %c0_9 = arith.constant 0 : index
      %c0_10 = arith.constant 0 : index
      %13 = vector.load %arg7[%c0_9, %c0_10] : memref<2x128xf32, #tpu.memory_space<vmem>>, vector<2x128xf32>
      tpu.vector_store %arg7[%c0_9, %c0_10], %12 {strides = array<i32>} : memref<2x128xf32, #tpu.memory_space<vmem>>, vector<2x128xf32>,
    } else {
    }
    %c0 = arith.constant 0 : index
    %c0_1 = arith.constant 0 : index
    %3 = vector.load %arg2[%c0, %c0_1] : memref<2x256xf32, #tpu.memory_space<vmem>>, vector<2x128xf32>
    %c0_2 = arith.constant 0 : index
    %c128 = arith.constant 128 : index
    %4 = vector.load %arg2[%c0_2, %c128] : memref<2x256xf32, #tpu.memory_space<vmem>>, vector<2x128xf32>
    %5 = arith.addf %3, %4 : vector<2x128xf32>
    %c0_3 = arith.constant 0 : index
    %c0_4 = arith.constant 0 : index
    %6 = vector.load %arg7[%c0_3, %c0_4] : memref<2x128xf32, #tpu.memory_space<vmem>>, vector<2x128xf32>
    %7 = arith.addf %6, %5 : vector<2x128xf32>
    %c0_5 = arith.constant 0 : index
    %c0_6 = arith.constant 0 : index
    %8 = vector.load %arg7[%c0_5, %c0_6] : memref<2x128xf32, #tpu.memory_space<vmem>>, vector<2x128xf32>
    tpu.vector_store %arg7[%c0_5, %c0_6], %7 {strides = array<i32>} : memref<2x128xf32, #tpu.memory_space<vmem>>, vector<2x128xf32>,
    %c0_i32_7 = arith.constant 0 : i32
    %9 = arith.cmpi eq, %arg1, %c0_i32_7 : i32
    %10 = arith.extui %9 : i1 to i32
    %c0_i32_8 = arith.constant 0 : i32
    %11 = arith.cmpi ne, %10, %c0_i32_8 : i32
    scf.if %11 {
      %c0_9 = arith.constant 0 : index
      %c0_10 = arith.constant 0 : index
      %12 = vector.load %arg7[%c0_9, %c0_10] : memref<2x128xf32, #tpu.memory_space<vmem>>, vector<2x128xf32>
      %c0_11 = arith.constant 0 : index
      %c0_12 = arith.constant 0 : index
      %13 = vector.load %arg3[%c0_11, %c0_12] : memref<128x128xf32, #tpu.memory_space<vmem>>, vector<128x128xf32>
      %cst = arith.constant dense<0.000000e+00> : vector<2x128xf32>
      %14 = tpu.matmul %12, %13, %cst {dimension_numbers = #tpu.dot_dimension_numbers<[1], [0], [0], [1], [0, 0, 1, 1], [], []>} : vector<2x128xf32>, vector<128x128xf32>, vector<2x128xf32> -> vector<2x128xf32>
      %c0_13 = arith.constant 0 : index
      %c0_14 = arith.constant 0 : index
      %15 = vector.load %arg4[%c0_13, %c0_14] : memref<1x128xf32, #tpu.memory_space<vmem>>, vector<1x128xf32>
      %16 = vector.broadcast %15 : vector<1x128xf32> to vector<2x128xf32>
      %17 = arith.addf %14, %16 : vector<2x128xf32>
      %18 = tpu.iota {dimensions = array<i32: 1>} : vector<2x128xi32>
      %c4_i32 = arith.constant 4 : i32
      %19 = vector.broadcast %c4_i32 : i32 to vector<2x128xi32>
      %20 = arith.cmpi slt, %18, %19 : vector<2x128xi32>
      %cst_15 = arith.constant 0xFF800000 : f32
      %21 = vector.broadcast %cst_15 : f32 to vector<2x128xf32>
      %22 = arith.select %20, %17, %21 : vector<2x128xi1>, vector<2x128xf32>
      %c0_16 = arith.constant 0 : index
      %c0_17 = arith.constant 0 : index
      %23 = vector.load %arg5[%c0_16, %c0_17] : memref<2x128xf32, #tpu.memory_space<vmem>>, vector<2x128xf32>
      tpu.vector_store %arg5[%c0_16, %c0_17], %22 {strides = array<i32>} : memref<2x128xf32, #tpu.memory_space<vmem>>, vector<2x128xf32>,
      %cst_18 = arith.constant dense<0xFF800000> : vector<2xf32>
      %24 = vector.multi_reduction <maximumf>, %22, %cst_18 [1] : vector<2x128xf32> to vector<2xf32>
      %25 = vector.shape_cast %24 : vector<2xf32> to vector<2x1xf32>
      %26 = vector.broadcast %25 : vector<2x1xf32> to vector<2x128xf32>
      %27 = arith.cmpf oeq, %22, %26 : vector<2x128xf32>
      %c128_i32 = arith.constant 128 : i32
      %28 = vector.broadcast %c128_i32 : i32 to vector<2x128xi32>
      %29 = arith.select %27, %18, %28 : vector<2x128xi1>, vector<2x128xi32>
      %cst_19 = arith.constant dense<2147483647> : vector<2xi32>
      %30 = vector.multi_reduction <minsi>, %29, %cst_19 [1] : vector<2x128xi32> to vector<2xi32>
      %31 = vector.shape_cast %30 : vector<2xi32> to vector<2x1xi32>
      %c0_20 = arith.constant 0 : index
      %c0_21 = arith.constant 0 : index
      %32 = vector.load %arg6[%c0_20, %c0_21] : memref<2x1xi32, #tpu.memory_space<vmem>>, vector<2x1xi32>
      tpu.vector_store %arg6[%c0_20, %c0_21], %31 {strides = array<i32>} : memref<2x1xi32, #tpu.memory_space<vmem>>, vector<2x1xi32>,
    } else {
    }
    return
  }
  func.func @transform_0(%arg0: i32, %arg1: i32) -> (i32, i32) {
    %c0_i32 = arith.constant 0 : i32
    return %arg0, %arg1 : i32, i32
  }
  func.func @transform_1(%arg0: i32, %arg1: i32) -> (i32, i32) {
    %c0_i32 = arith.constant 0 : i32
    %c0_i32_0 = arith.constant 0 : i32
    %c0_i32_1 = arith.constant 0 : i32
    return %c0_i32, %c0_i32_0 : i32, i32
  }
  func.func @transform_2(%arg0: i32, %arg1: i32) -> (i32, i32) {
    %c0_i32 = arith.constant 0 : i32
    %c0_i32_0 = arith.constant 0 : i32
    %c0_i32_1 = arith.constant 0 : i32
    return %c0_i32, %c0_i32_0 : i32, i32
  }
  func.func @transform_3(%arg0: i32, %arg1: i32) -> (i32, i32) {
    %c0_i32 = arith.constant 0 : i32
    %c0_i32_0 = arith.constant 0 : i32
    return %arg0, %c0_i32 : i32, i32
  }
  func.func @transform_4(%arg0: i32, %arg1: i32) -> (i32, i32) {
    %c0_i32 = arith.constant 0 : i32
    %c0_i32_0 = arith.constant 0 : i32
    return %arg0, %c0_i32 : i32, i32
  }
}

</mosaic_0001>

<llo_original>
// kernel: tpu_custom_call.1
$region0: #{tpu_custom_call.1}
  #allocation0 [shape = 'u32[]', space=smem, size = 0x4, offset = 0x4, fixed_abs, tag = 'smem constant byte address 0x4 - core index']
  #allocation1 [shape = 'u32[144,128]{1,0:T(1,128)}', space=vmem, size = 0x12000, scoped, tag = 'internal scratch']
  #allocation2 [shape = 'f32[2,128]{1,0:T(2,128)}', space=vmem, size = 0x400, scoped, tag = 'scratch operand']
  %s0 = inlined_call_operand.hbm [shape: f32[2,256], index: 0, kind: input, shape index: {}]
  %s1 = inlined_call_operand.hbm [shape: f32[128,128], index: 1, kind: input, shape index: {}]
  %s2 = inlined_call_operand.vmem [shape: f32[1,128], index: 2, kind: input, shape index: {}]
  %s3 = inlined_call_operand.hbm [shape: f32[2,128], index: 3, kind: output, shape index: {0}]
  %s4 = inlined_call_operand.vmem [shape: s32[2,1], index: 4, kind: output, shape index: {1}]
  %5 = xla_tuple %s3, %s4
  %s6 = sld [smem:[#allocation0]]
  $region46: #{tpu_custom_call.1} parent=0
    _
  %s8 = ssub.s32 1, %s6
  %s9 = scalar_select 0, %s8, %s6
  $region1: #{tpu_custom_call.1} parent=0
    #allocation3 [shape = 'u8[2048]{0}', space=vmem, size = 0x800, scoped, tag = 'input window, operand 0, single buffered']
    #allocation4 [shape = 's32[1]{0}', space=sflag, size = 0x4, scoped, tag = 'scoped memory for tpu_custom_call.1']
    #allocation5 [shape = 's32[1]{0}', space=sflag, size = 0x4, scoped, tag = 'scoped memory for tpu_custom_call.1']
    #allocation6 [shape = 'u8[65536]{0}', space=vmem, size = 0x10000, scoped, tag = 'input window, operand 1, single buffered']
    #allocation7 [shape = 's32[1]{0}', space=sflag, size = 0x4, scoped, tag = 'scoped memory for tpu_custom_call.1']
    #allocation8 [shape = 'u8[1024]{0}', space=vmem, size = 0x400, scoped, tag = 'output window, operand 0, single buffered']
    %10 = vsyncpa [#allocation4], 0
    %11 = vsyncpa [#allocation7], 0
    %12 = vsyncpa [#allocation5], 0
    // Predicated region
    $region2: #{tpu_custom_call.1} parent=1 // pred_check
      _
    $region3: #{tpu_custom_call.1} parent=1 // pred_check_branch
      %14 = sbr.rel (0) target = $region5
    $region4: #{tpu_custom_call.1} parent=1 // pred_region
      %s16 = ssub.s32 64, 64
      %17 = vsyncadd [#allocation4], %s16
      %s19 = sshll.u32 [#allocation3], 4
      %s20 = int_to_ptr.vmem [resolvable:$true] %s19
      %22 = dma.hbm_to_vmem [thread:$0]  %s0, 64, %s20, [#allocation4]
    $region5: #{tpu_custom_call.1} parent=1 // pred_fallthru
      _
    // Predicated region
    $region6: #{tpu_custom_call.1} parent=1 // pred_check
      _
    $region7: #{tpu_custom_call.1} parent=1 // pred_check_branch
      %24 = sbr.rel (0) target = $region9
    $region8: #{tpu_custom_call.1} parent=1 // pred_region
      %s26 = ssub.s32 2048, 2048
      %27 = vsyncadd [#allocation7], %s26
      %s28 = sshll.u32 [#allocation6], 4
      %s29 = int_to_ptr.vmem [resolvable:$true] %s28
      %34 = dma.hbm_to_vmem [thread:$0]  %s1, 2048, %s29, [#allocation7], 128, 128, 8
    $region9: #{tpu_custom_call.1} parent=1 // pred_fallthru
      _
    // Predicated region
    $region10: #{tpu_custom_call.1} parent=1 // pred_check
      _
    $region11: #{tpu_custom_call.1} parent=1 // pred_check_branch
      %36 = sbr.rel (0) target = $region13
    $region12: #{tpu_custom_call.1} parent=1 // pred_region
      _
    $region13: #{tpu_custom_call.1} parent=1 // pred_fallthru
      _
    // Predicated region
    $region14: #{tpu_custom_call.1} parent=1 // pred_check
      _
    $region15: #{tpu_custom_call.1} parent=1 // pred_check_branch
      %38 = sbr.rel (0) target = $region17
    $region16: #{tpu_custom_call.1} parent=1 // pred_region
      %39 = dma.done [#allocation4], 64
    $region17: #{tpu_custom_call.1} parent=1 // pred_fallthru
      _
    // Predicated region
    $region18: #{tpu_custom_call.1} parent=1 // pred_check
      _
    $region19: #{tpu_custom_call.1} parent=1 // pred_check_branch
      %41 = sbr.rel (0) target = $region21
    $region20: #{tpu_custom_call.1} parent=1 // pred_region
      %42 = dma.done [#allocation7], 2048
    $region21: #{tpu_custom_call.1} parent=1 // pred_fallthru
      _
    %p43 = scmp.eq.s32.totalorder 0, 0
    // Predicated region
    $region22: #{tpu_custom_call.1} parent=1 // pred_check
      %p44 = pneg %p43
    $region23: #{tpu_custom_call.1} parent=1 // pred_check_branch
      %46 = sbr.rel (%p44) target = $region25
    $region24: #{tpu_custom_call.1} parent=1 // pred_region
      %47 = vst [vmem:[#allocation2] sm:$0x3] 0.0
    $region25: #{tpu_custom_call.1} parent=1 // pred_fallthru
      _
    %v48 = vld [vmem:[#allocation3] sm:$0x3]
    %v49 = vld [vmem:[#allocation3 + $0x2] sm:$0x3]
    %v50 = vadd.f32 %v48, %v49
    %v51 = vld [vmem:[#allocation2] sm:$0x3]
    %v52 = vadd.f32 %v51, %v50
    %53 = vst [vmem:[#allocation2] sm:$0x3] %v52
    // Predicated region
    $region26: #{tpu_custom_call.1} parent=1 // pred_check
      %p54 = pneg %p43
    $region27: #{tpu_custom_call.1} parent=1 // pred_check_branch
      %56 = sbr.rel (%p54) target = $region29
    $region28: #{tpu_custom_call.1} parent=1 // pred_region
      %v57 = vld [vmem:[#allocation2] sm:$0x3]
      %v58 = vld [vmem:[#allocation6] sm:$0xff]
      %v59 = vld [vmem:[#allocation6 + $0x8] sm:$0xff]
      %v60 = vld [vmem:[#allocation6 + $0x10] sm:$0xff]
      %v61 = vld [vmem:[#allocation6 + $0x18] sm:$0xff]
      %v62 = vld [vmem:[#allocation6 + $0x20] sm:$0xff]
      %v63 = vld [vmem:[#allocation6 + $0x28] sm:$0xff]
      %v64 = vld [vmem:[#allocation6 + $0x30] sm:$0xff]
      %v65 = vld [vmem:[#allocation6 + $0x38] sm:$0xff]
      %v66 = vld [vmem:[#allocation6 + $0x40] sm:$0xff]
      %v67 = vld [vmem:[#allocation6 + $0x48] sm:$0xff]
      %v68 = vld [vmem:[#allocation6 + $0x50] sm:$0xff]
      %v69 = vld [vmem:[#allocation6 + $0x58] sm:$0xff]
      %v70 = vld [vmem:[#allocation6 + $0x60] sm:$0xff]
      %v71 = vld [vmem:[#allocation6 + $0x68] sm:$0xff]
      %v72 = vld [vmem:[#allocation6 + $0x70] sm:$0xff]
      %v73 = vld [vmem:[#allocation6 + $0x78] sm:$0xff]
      %v74 = vld [vmem:[%s2] sm:$0x1]
      %v76 = vlaneseq
      %v77 = vshrl.u32 %v76, 7
      %v78 = vsub.s32 0, %v77
      %v79 = vrot.slane %v74, %v78
      %81 = vmatprep.subr.mxu0 0.0
      %82 = vmatpush1.msra.mxu0 %v58
      %83 = vmatprep.subr.mxu0 0.0
      %84 = vmatpush1.msra.mxu0 %v59
      %85 = vmatprep.subr.mxu0 0.0
      %86 = vmatpush1.msra.mxu0 %v60
      %87 = vmatprep.subr.mxu0 0.0
      %88 = vmatpush1.msra.mxu0 %v61
      %89 = vmatprep.subr.mxu0 0.0
      %90 = vmatpush1.msra.mxu0 %v62
      %91 = vmatprep.subr.mxu0 0.0
      %92 = vmatpush1.msra.mxu0 %v63
      %93 = vmatprep.subr.mxu0 0.0
      %94 = vmatpush1.msra.mxu0 %v64
      %95 = vmatprep.subr.mxu0 0.0
      %96 = vmatpush1.msra.mxu0 %v65
      %97 = vmatprep.subr.mxu0 0.0
      %98 = vmatpush1.msra.mxu0 %v66
      %99 = vmatprep.subr.mxu0 0.0
      %100 = vmatpush1.msra.mxu0 %v67
      %101 = vmatprep.subr.mxu0 0.0
      %102 = vmatpush1.msra.mxu0 %v68
      %103 = vmatprep.subr.mxu0 0.0
      %104 = vmatpush1.msra.mxu0 %v69
      %105 = vmatprep.subr.mxu0 0.0
      %106 = vmatpush1.msra.mxu0 %v70
      %107 = vmatprep.subr.mxu0 0.0
      %108 = vmatpush1.msra.mxu0 %v71
      %109 = vmatprep.subr.mxu0 0.0
      %110 = vmatpush1.msra.mxu0 %v72
      %111 = vmatprep.subr.mxu0 0.0
      %112 = vmatpush1.msra.mxu0 %v73
      %113 = vmatprep.subr.mxu0 0.0
      %114 = vmatpush1.msra.mxu0 0.0
      %115 = vmatprep.subr.mxu0 0.0
      %116 = vmatpush1.msra.mxu0 0.0
      %117 = vmatprep.subr.mxu0 0.0
      %118 = vmatpush1.msra.mxu0 0.0
      %119 = vmatprep.subr.mxu0 0.0
      %120 = vmatpush1.msra.mxu0 0.0
      %121 = vmatprep.subr.mxu0 0.0
      %122 = vmatpush1.msra.mxu0 0.0
      %123 = vmatprep.subr.mxu0 0.0
      %124 = vmatpush1.msra.mxu0 0.0
      %125 = vmatprep.subr.mxu0 0.0
      %126 = vmatpush1.msra.mxu0 0.0
      %127 = vmatprep.subr.mxu0 0.0
      %128 = vmatpush1.msra.mxu0 0.0
      %129 = vmatprep.subr.mxu0 0.0
      %130 = vmatpush1.msra.mxu0 0.0
      %131 = vmatprep.subr.mxu0 0.0
      %132 = vmatpush1.msra.mxu0 0.0
      %133 = vmatprep.subr.mxu0 0.0
      %134 = vmatpush1.msra.mxu0 0.0
      %135 = vmatprep.subr.mxu0 0.0
      %136 = vmatpush1.msra.mxu0 0.0
      %137 = vmatprep.subr.mxu0 0.0
      %138 = vmatpush1.msra.mxu0 0.0
      %139 = vmatprep.subr.mxu0 0.0
      %140 = vmatpush1.msra.mxu0 0.0
      %141 = vmatprep.subr.mxu0 0.0
      %142 = vmatpush1.msra.mxu0 0.0
      %143 = vmatprep.subr.mxu0 0.0
      %144 = vmatpush1.msra.mxu0 0.0
      %145 = vmatprep.mubr.f32.mxu0 0.0
      %146 = vmatmul.mubr.f32.gmra.mrb[0].mxu0 %v57
      %v147 = vpop.f32.mrb[0].mxu0
      %v148 = vadd.f32 %v79, %v147
      %v149 = vpop.f32.mrb[0].mxu0
      %150 = vdwg.mxu0
      %v151 = vlaneseq
      %v152 = vand.u32 %v151, 127
      %vm153 = vcmp.lt.s32.totalorder %v152, 4
      %v154 = vsel %vm153, %v148, -inf
      %155 = vst [vmem:[#allocation8] sm:$0x3] %v154
      %vm156 = vcmask 1041408
      %v157 = vsel %vm156, %v154, -inf
      %158 = vmax.xlane.f32.xlu0 %v157
      %v159 = vpop.xlane.xlu0 %158
      %vm160 = vcmp.eq.f32.partialorder %v154, %v159
      %v161 = vsel %vm160, %v152, 128
      %v162 = vsel %vm156, %v161, 2147483647
      %v163 = vand.u32 %v162, 65535
      %v164 = vshra.s32 %v162, 16
      %v165 = vcvt.s32.f32 %v163
      %v166 = vcvt.s32.f32 %v164
      %167 = vmin.xlane.f32.xlu0 %v166
      %v168 = vpop.xlane.xlu0 %167
      %vm169 = vcmp.eq.f32.partialorder %v166, %v168
      %v170 = vsel %vm169, %v165, inf
      %171 = vmin.xlane.f32.xlu0 %v170
      %v172 = vpop.xlane.xlu0 %171
      %v173 = vcvt.f32.s32 %v172
      %v174 = vcvt.f32.s32 %v168
      %v175 = vshll.u32 %v174, 16
      %v176 = vadd.s32 %v175, %v173
      %vm177 = vcmask 1024
      %178 = vst.msk [vmem:[%s4] sm:$0x3] %vm177, %v176
    $region29: #{tpu_custom_call.1} parent=1 // pred_fallthru
      _
    // Predicated region
    $region30: #{tpu_custom_call.1} parent=1 // pred_check
      _
    $region31: #{tpu_custom_call.1} parent=1 // pred_check_branch
      %180 = sbr.rel (0) target = $region33
    $region32: #{tpu_custom_call.1} parent=1 // pred_region
      %s182 = ssub.s32 32, 32
      %183 = vsyncadd [#allocation5], %s182
      %s185 = sshll.u32 [#allocation8], 4
      %s186 = int_to_ptr.vmem [resolvable:$true] %s185
      %188 = dma.vmem_to_hbm [thread:$0]  %s186, 32, %s3, [#allocation5]
    $region33: #{tpu_custom_call.1} parent=1 // pred_fallthru
      _
    // Predicated region
    $region34: #{tpu_custom_call.1} parent=1 // pred_check
      _
    $region35: #{tpu_custom_call.1} parent=1 // pred_check_branch
      %190 = sbr.rel (0) target = $region37
    $region36: #{tpu_custom_call.1} parent=1 // pred_region
      _
    $region37: #{tpu_custom_call.1} parent=1 // pred_fallthru
      _
    // Predicated region
    $region38: #{tpu_custom_call.1} parent=1 // pred_check
      _
    $region39: #{tpu_custom_call.1} parent=1 // pred_check_branch
      %192 = sbr.rel (0) target = $region41
    $region40: #{tpu_custom_call.1} parent=1 // pred_region
      %193 = dma.done [#allocation5], 32
    $region41: #{tpu_custom_call.1} parent=1 // pred_fallthru
      _
    // Predicated region
    $region42: #{tpu_custom_call.1} parent=1 // pred_check
      _
    $region43: #{tpu_custom_call.1} parent=1 // pred_check_branch
      %195 = sbr.rel (0) target = $region45
    $region44: #{tpu_custom_call.1} parent=1 // pred_region
      _
    $region45: #{tpu_custom_call.1} parent=1 // pred_fallthru
      _
    %196 = vsyncpa [#allocation4], 1
    %197 = vsyncpa [#allocation7], 1
    %198 = vsyncpa [#allocation5], 1

</llo_original>
